<compile_context>
chip_gen: v5e
topology: v5e:2x2
jax: 0.10.0
libtpu: 0.0.40
codegen_flags: <defaults>
</compile_context>

<pallas_src>
import random
from functools import partial

import jax
import jax.numpy as jnp
from jax.experimental import pallas as pl
from jax.experimental.pallas import tpu as pltpu

EPS = 1e-5


def _device_kind():
    try:
        return jax.devices()[0].device_kind.lower()
    except Exception:
        return ""


def _mlp_kernel(x_ref, w1_ref, gb_ref, w2_ref, b2_ref, o_ref):
    c = pl.program_id(0)   # inner_dim split (parallel across TCs on v7x)
    k = pl.program_id(1)   # inner_dim block within a split (reduction axis)

    @pl.when(k == 0)
    def _():
        # Accumulate directly into the resident f32 output slab (no scratch).
        # Fold b2 into the init of split 0; other splits start at zero and are
        # summed outside the kernel.
        bias = jnp.broadcast_to(b2_ref[...], o_ref.shape)
        o_ref[...] = jnp.where(c == 0, bias, jnp.zeros_like(bias))

    # Linear 1 (bf16 operands, f32 MXU accumulation).  Linear-1 bias is
    # intentionally omitted: training-mode BatchNorm subtracts the per-feature
    # batch mean, so a constant per-column bias cancels exactly.  If BN is
    # ever switched to eval-mode running stats, the bias must come back.
    h = jnp.dot(x_ref[...], w1_ref[...], preferred_element_type=jnp.float32)

    # BatchNorm1d (training-mode batch stats) folded to one scale/shift FMA.
    # One-pass stats; clamp variance at 0 to guard against tiny negatives from
    # bf16 matmul rounding in E[h^2] - mean^2.
    mean = jnp.mean(h, axis=0, keepdims=True)
    var = jnp.maximum(jnp.mean(h * h, axis=0, keepdims=True) - mean * mean, 0.0)
    scale = gb_ref[0:1, :] * jax.lax.rsqrt(var + EPS)    # gamma row
    shift = gb_ref[1:2, :] - mean * scale                # beta row
    h_act = jnp.maximum(h * scale + shift, 0.0)          # BN + ReLU

    # Linear 2 partial product for this inner_dim block, accumulated in f32
    # directly in the output ref (resident: its block index is constant in k).
    o_ref[...] += jnp.dot(
        h_act.astype(jnp.bfloat16), w2_ref[...], preferred_element_type=jnp.float32
    )


def prepare_mlp_params(w1, b1, gamma, beta, w2, b2):
    """One-time parameter prep (keep out of the per-call eager path).

    Weights are stored bf16 (halves weight HBM->VMEM bytes; matmuls still
    accumulate in f32) and gamma/beta are packed into a single (2, inner_dim)
    operand.  b1 is accepted for interface parity but unused: it cancels
    exactly under training-mode BatchNorm.
    """
    del b1
    return dict(
        w1=w1.astype(jnp.bfloat16),
        gb=jnp.stack([gamma, beta]).astype(jnp.float32),
        w2=w2.astype(jnp.bfloat16),
        b2=b2.reshape(1, -1).astype(jnp.float32),
    )


def _pick_block_k(inner_dim, kind):
    if "v7" in kind:
        target = 256           # v7x: 64 MiB VMEM -> smaller per-step working set
    elif inner_dim >= 4096:
        target = 1024          # v5e/v6e: 128 MiB VMEM, amortize per-step overhead
    else:
        target = 512
    bk = min(target, inner_dim)
    while bk > 128 and inner_dim % bk != 0:
        bk -= 128
    return bk


def mlp_forward(x, params, *, block_k=None, num_splits=None):
    """Forward of MLP(chan, chan_out, inner_dim) with training-mode BN.

    NOTE: for production throughput B should be a multiple of 256 on v6e/v7x
    (128 on v5e) so the MXU M dimension stays full.  Never tile over B (that
    would break training-mode BatchNorm statistics).
    """
    B, chan = x.shape
    w1, gb, w2, b2 = params["w1"], params["gb"], params["w2"], params["b2"]
    inner_dim, chan_out = w2.shape
    assert w1.shape == (chan, inner_dim)
    assert gb.shape == (2, inner_dim)
    assert b2.shape == (1, chan_out)

    kind = _device_kind()

    if block_k is None:
        block_k = _pick_block_k(inner_dim, kind)
    assert inner_dim % block_k == 0 and block_k % 128 == 0
    num_k = inner_dim // block_k

    # v7x has two TensorCores per chip: split the inner_dim reduction across a
    # leading "parallel" grid axis (per-core partial output slabs summed with
    # one XLA add).  Single-TC chips (v5e/v6e) keep num_splits = 1.
    if num_splits is None:
        num_splits = 2 if ("v7" in kind and num_k % 2 == 0 and num_k >= 2) else 1
    if num_k % num_splits != 0:
        num_splits = 1
    kps = num_k // num_splits   # k blocks per split

    # Cast x once here (fuses under jit); the kernel keeps x resident in VMEM
    # as bf16 and never re-casts it per grid step.
    x_bf16 = x.astype(jnp.bfloat16)

    # Deeper buffering on the dominant w1 DMA stream when the kernel is
    # weight-DMA-bound (small batch) -- mostly a v5e concern.
    deep_w1 = (B <= 256) and (kps >= 4)
    w1_map = lambda c, k: (0, c * kps + k)
    if deep_w1:
        w1_spec = pl.BlockSpec((chan, block_k), w1_map, pipeline_mode=pl.Buffered(3))
    else:
        w1_spec = pl.BlockSpec((chan, block_k), w1_map)

    # Explicit scoped-VMEM limit sized to the real footprint: resident bf16 x,
    # resident f32 output slab, buffered w1/w2 blocks, packed gamma/beta, b2,
    # and ~3 (B, block_k) f32 intermediates -- with 1.5x headroom, capped at
    # the generation's physical VMEM.
    n_w1_buf = 3 if deep_w1 else 2
    footprint = (
        B * chan * 2
        + B * chan_out * 4
        + n_w1_buf * chan * block_k * 2
        + 2 * block_k * chan_out * 2
        + 2 * 2 * block_k * 4
        + 2 * chan_out * 4
        + 3 * B * block_k * 4
    )
    vmem_cap = (64 << 20) if "v7" in kind else (128 << 20)
    vmem_limit = min(vmem_cap, max(32 << 20, int(footprint * 1.5)))

    partials = pl.pallas_call(
        _mlp_kernel,
        out_shape=jax.ShapeDtypeStruct((num_splits, B, chan_out), jnp.float32),
        grid_spec=pltpu.PrefetchScalarGridSpec(
            num_scalar_prefetch=0,
            grid=(num_splits, kps),
            in_specs=[
                pl.BlockSpec((B, chan), lambda c, k: (0, 0)),                 # x (resident, bf16)
                w1_spec,                                                      # w1 column block
                pl.BlockSpec((2, block_k), lambda c, k: (0, c * kps + k)),    # [gamma; beta] block
                pl.BlockSpec((block_k, chan_out), lambda c, k: (c * kps + k, 0)),  # w2 row block
                pl.BlockSpec((1, chan_out), lambda c, k: (0, 0)),             # b2 (resident)
            ],
            out_specs=pl.BlockSpec(
                (pl.Squeezed(), B, chan_out), lambda c, k: (c, 0, 0)
            ),
        ),
        compiler_params=pltpu.CompilerParams(
            dimension_semantics=("parallel", "arbitrary"),
            vmem_limit_bytes=vmem_limit,
        ),
    )(x_bf16, w1, gb, w2, b2)

    if num_splits == 1:
        return partials[0]
    return jnp.sum(partials, axis=0)


def random_apply(fn, p, x, *, rng=random):
    """RandomApply.forward: apply `fn` with probability p, else identity.

    TODO(synk): the coin flip is host-side Python control flow (random.random())
    with no Pallas equivalent; it is kept on the host exactly as in PyTorch.
    """
    if rng.random() > p:
        return x
    return fn(x)


def _reference(x, w1, b1, gamma, beta, w2, b2):
    h = x @ w1 + b1
    mean = jnp.mean(h, axis=0, keepdims=True)
    var = jnp.mean((h - mean) ** 2, axis=0, keepdims=True)
    h = (h - mean) / jnp.sqrt(var + EPS) * gamma + beta
    h = jnp.maximum(h, 0.0)
    return h @ w2 + b2


if __name__ == "__main__":
    # Small shapes consistent with MLP(chan, chan_out=256, inner_dim=2048),
    # scaled down for a quick synthetic run.  block_k=128 exercises the
    # inner_dim grid (2 accumulation steps).
    B, chan, inner_dim, chan_out = 8, 32, 256, 128

    key = jax.random.PRNGKey(0)
    kx, kw1, kb1, kw2, kb2 = jax.random.split(key, 5)

    x = jax.random.normal(kx, (B, chan), dtype=jnp.float32)

    # Deterministic parameter init (PyTorch-Linear-style uniform bounds).
    lim1 = 1.0 / (chan ** 0.5)
    w1 = jax.random.uniform(kw1, (chan, inner_dim), jnp.float32, -lim1, lim1)
    b1 = jax.random.uniform(kb1, (inner_dim,), jnp.float32, -lim1, lim1)
    gamma = jnp.ones((inner_dim,), jnp.float32)     # BatchNorm1d weight init
    beta = jnp.zeros((inner_dim,), jnp.float32)     # BatchNorm1d bias init
    lim2 = 1.0 / (inner_dim ** 0.5)
    w2 = jax.random.uniform(kw2, (inner_dim, chan_out), jnp.float32, -lim2, lim2)
    b2 = jax.random.uniform(kb2, (chan_out,), jnp.float32, -lim2, lim2)

    # One-time parameter prep (bf16 weights, packed gamma/beta) -- out of the
    # per-call path; the whole forward is jitted.
    params = prepare_mlp_params(w1, b1, gamma, beta, w2, b2)
    ref = _reference(x, w1, b1, gamma, beta, w2, b2)

    # Exercise both the single-split path and the v7x two-TensorCore split.
    for splits in (1, 2):
        fn = jax.jit(partial(mlp_forward, params=params, block_k=128, num_splits=splits))
        # RandomApply with p=1.0 -> fn is always applied (random.random() < 1.0),
        # matching the deterministic-check requirement.
        random.seed(0)
        out = random_apply(fn, 1.0, x)
        out = jax.block_until_ready(out)
        assert out.shape == (B, chan_out)
        # bf16 matmul operands (f32 accumulation) vs. the pure-f32 reference.
        assert jnp.allclose(out, ref, atol=2e-2, rtol=2e-2), (
            splits, float(jnp.max(jnp.abs(out - ref))))

    print("KERNEL_OK")
</pallas_src>

<mosaic_0001>
module attributes {stable_mosaic.version = 11 : i64} {
  func.func @_mlp_kernel(%arg0: i32, %arg1: i32, %arg2: memref<8x32xbf16, #tpu.memory_space<vmem>>, %arg3: memref<32x128xbf16, #tpu.memory_space<vmem>>, %arg4: memref<2x128xf32, #tpu.memory_space<vmem>>, %arg5: memref<128x128xbf16, #tpu.memory_space<vmem>>, %arg6: memref<1x128xf32, #tpu.memory_space<vmem>>, %arg7: memref<1x8x128xf32, #tpu.memory_space<vmem>>) attributes {dimension_semantics = [#tpu.dimension_semantics<parallel>, #tpu.dimension_semantics<arbitrary>], iteration_bounds = array<i64: 1, 2>, scalar_prefetch = 0 : i64, scratch_operands = 0 : i64, tpu.core_type = #tpu.core_type<tc>, window_params = [{pipeline_mode = #tpu.pipeline_mode<synchronous>, transform_indices = @transform_0, window_bounds = array<i64: 8, 32>}, {transform_indices = @transform_1, window_bounds = array<i64: 32, 128>}, {transform_indices = @transform_2, window_bounds = array<i64: 2, 128>}, {transform_indices = @transform_3, window_bounds = array<i64: 128, 128>}, {pipeline_mode = #tpu.pipeline_mode<synchronous>, transform_indices = @transform_4, window_bounds = array<i64: 1, 128>}, {transform_indices = @transform_5, window_bounds = array<i64: 1, 8, 128>}]} {
    %c0_i32 = arith.constant 0 : i32
    %0 = arith.cmpi eq, %arg1, %c0_i32 : i32
    %1 = arith.extui %0 : i1 to i32
    %c0_i32_0 = arith.constant 0 : i32
    %2 = arith.cmpi ne, %1, %c0_i32_0 : i32
    scf.if %2 {
      %c0_23 = arith.constant 0 : index
      %c0_24 = arith.constant 0 : index
      %42 = vector.load %arg6[%c0_23, %c0_24] : memref<1x128xf32, #tpu.memory_space<vmem>>, vector<1x128xf32>
      %43 = vector.shape_cast %42 : vector<1x128xf32> to vector<1x128xf32>
      %44 = vector.broadcast %43 : vector<1x128xf32> to vector<8x128xf32>
      %c0_i32_25 = arith.constant 0 : i32
      %45 = arith.cmpi eq, %arg0, %c0_i32_25 : i32
      %cst_26 = arith.constant 0.000000e+00 : f32
      %46 = vector.broadcast %cst_26 : f32 to vector<8x128xf32>
      %47 = arith.select %45, %44, %46 : vector<8x128xf32>
      %c0_27 = arith.constant 0 : index
      %c0_28 = arith.constant 0 : index
      %c0_29 = arith.constant 0 : index
      %48 = vector.load %arg7[%c0_27, %c0_28, %c0_29] : memref<1x8x128xf32, #tpu.memory_space<vmem>>, vector<1x8x128xf32>
      %49 = vector.shape_cast %48 : vector<1x8x128xf32> to vector<8x128xf32>
      %50 = vector.shape_cast %47 : vector<8x128xf32> to vector<1x8x128xf32>
      tpu.vector_store %arg7[%c0_27, %c0_28, %c0_29], %50 {strides = array<i32>} : memref<1x8x128xf32, #tpu.memory_space<vmem>>, vector<1x8x128xf32>,
    } else {
    }
    %c0 = arith.constant 0 : index
    %c0_1 = arith.constant 0 : index
    %3 = vector.load %arg2[%c0, %c0_1] : memref<8x32xbf16, #tpu.memory_space<vmem>>, vector<8x32xbf16>
    %c0_2 = arith.constant 0 : index
    %c0_3 = arith.constant 0 : index
    %4 = vector.load %arg3[%c0_2, %c0_3] : memref<32x128xbf16, #tpu.memory_space<vmem>>, vector<32x128xbf16>
    %cst = arith.constant dense<0.000000e+00> : vector<8x128xf32>
    %5 = tpu.matmul %3, %4, %cst {dimension_numbers = #tpu.dot_dimension_numbers<[1], [0], [0], [1], [0, 0, 1, 1], [], []>} : vector<8x32xbf16>, vector<32x128xbf16>, vector<8x128xf32> -> vector<8x128xf32>
    %cst_4 = arith.constant dense<0.000000e+00> : vector<128xf32>
    %6 = vector.multi_reduction <add>, %5, %cst_4 [0] : vector<8x128xf32> to vector<128xf32>
    %7 = vector.shape_cast %6 : vector<128xf32> to vector<1x128xf32>
    %cst_5 = arith.constant 8.000000e+00 : f32
    %8 = vector.broadcast %cst_5 : f32 to vector<1x128xf32>
    %9 = arith.divf %7, %8 : vector<1x128xf32>
    %10 = arith.mulf %5, %5 : vector<8x128xf32>
    %cst_6 = arith.constant dense<0.000000e+00> : vector<128xf32>
    %11 = vector.multi_reduction <add>, %10, %cst_6 [0] : vector<8x128xf32> to vector<128xf32>
    %12 = vector.shape_cast %11 : vector<128xf32> to vector<1x128xf32>
    %cst_7 = arith.constant 8.000000e+00 : f32
    %13 = vector.broadcast %cst_7 : f32 to vector<1x128xf32>
    %14 = arith.divf %12, %13 : vector<1x128xf32>
    %15 = arith.mulf %9, %9 : vector<1x128xf32>
    %16 = arith.subf %14, %15 : vector<1x128xf32>
    %cst_8 = arith.constant 0.000000e+00 : f32
    %17 = vector.broadcast %cst_8 : f32 to vector<1x128xf32>
    %18 = arith.maximumf %16, %17 : vector<1x128xf32>
    %c0_9 = arith.constant 0 : index
    %c0_10 = arith.constant 0 : index
    %19 = vector.load %arg4[%c0_9, %c0_10] : memref<2x128xf32, #tpu.memory_space<vmem>>, vector<1x128xf32>
    %cst_11 = arith.constant 9.99999974E-6 : f32
    %20 = vector.broadcast %cst_11 : f32 to vector<1x128xf32>
    %21 = arith.addf %18, %20 : vector<1x128xf32>
    %22 = math.rsqrt %21 : vector<1x128xf32>
    %23 = arith.mulf %19, %22 : vector<1x128xf32>
    %c1 = arith.constant 1 : index
    %c0_12 = arith.constant 0 : index
    %24 = vector.load %arg4[%c1, %c0_12] : memref<2x128xf32, #tpu.memory_space<vmem>>, vector<1x128xf32>
    %25 = arith.mulf %9, %23 : vector<1x128xf32>
    %26 = arith.subf %24, %25 : vector<1x128xf32>
    %27 = vector.broadcast %23 : vector<1x128xf32> to vector<8x128xf32>
    %28 = arith.mulf %5, %27 : vector<8x128xf32>
    %29 = vector.broadcast %26 : vector<1x128xf32> to vector<8x128xf32>
    %30 = arith.addf %28, %29 : vector<8x128xf32>
    %cst_13 = arith.constant 0.000000e+00 : f32
    %31 = vector.broadcast %cst_13 : f32 to vector<8x128xf32>
    %32 = arith.maximumf %30, %31 : vector<8x128xf32>
    %c0_14 = arith.constant 0 : index
    %c0_15 = arith.constant 0 : index
    %c0_16 = arith.constant 0 : index
    %33 = vector.load %arg7[%c0_14, %c0_15, %c0_16] : memref<1x8x128xf32, #tpu.memory_space<vmem>>, vector<1x8x128xf32>
    %34 = vector.shape_cast %33 : vector<1x8x128xf32> to vector<8x128xf32>
    %35 = arith.truncf %32 : vector<8x128xf32> to vector<8x128xbf16>
    %c0_17 = arith.constant 0 : index
    %c0_18 = arith.constant 0 : index
    %36 = vector.load %arg5[%c0_17, %c0_18] : memref<128x128xbf16, #tpu.memory_space<vmem>>, vector<128x128xbf16>
    %cst_19 = arith.constant dense<0.000000e+00> : vector<8x128xf32>
    %37 = tpu.matmul %35, %36, %cst_19 {dimension_numbers = #tpu.dot_dimension_numbers<[1], [0], [0], [1], [0, 0, 1, 1], [], []>} : vector<8x128xbf16>, vector<128x128xbf16>, vector<8x128xf32> -> vector<8x128xf32>
    %38 = arith.addf %34, %37 : vector<8x128xf32>
    %c0_20 = arith.constant 0 : index
    %c0_21 = arith.constant 0 : index
    %c0_22 = arith.constant 0 : index
    %39 = vector.load %arg7[%c0_20, %c0_21, %c0_22] : memref<1x8x128xf32, #tpu.memory_space<vmem>>, vector<1x8x128xf32>
    %40 = vector.shape_cast %39 : vector<1x8x128xf32> to vector<8x128xf32>
    %41 = vector.shape_cast %38 : vector<8x128xf32> to vector<1x8x128xf32>
    tpu.vector_store %arg7[%c0_20, %c0_21, %c0_22], %41 {strides = array<i32>} : memref<1x8x128xf32, #tpu.memory_space<vmem>>, vector<1x8x128xf32>,
    return
  }
  func.func @transform_0(%arg0: i32, %arg1: i32) -> (i32, i32) {
    %c0_i32 = arith.constant 0 : i32
    %c0_i32_0 = arith.constant 0 : i32
    %c0_i32_1 = arith.constant 0 : i32
    return %c0_i32, %c0_i32_0 : i32, i32
  }
  func.func @transform_1(%arg0: i32, %arg1: i32) -> (i32, i32) {
    %c2_i32 = arith.constant 2 : i32
    %0 = arith.muli %arg0, %c2_i32 : i32
    %1 = arith.addi %0, %arg1 : i32
    %c0_i32 = arith.constant 0 : i32
    %c0_i32_0 = arith.constant 0 : i32
    return %c0_i32, %1 : i32, i32
  }
  func.func @transform_2(%arg0: i32, %arg1: i32) -> (i32, i32) {
    %c2_i32 = arith.constant 2 : i32
    %0 = arith.muli %arg0, %c2_i32 : i32
    %1 = arith.addi %0, %arg1 : i32
    %c0_i32 = arith.constant 0 : i32
    %c0_i32_0 = arith.constant 0 : i32
    return %c0_i32, %1 : i32, i32
  }
  func.func @transform_3(%arg0: i32, %arg1: i32) -> (i32, i32) {
    %c2_i32 = arith.constant 2 : i32
    %0 = arith.muli %arg0, %c2_i32 : i32
    %1 = arith.addi %0, %arg1 : i32
    %c0_i32 = arith.constant 0 : i32
    %c0_i32_0 = arith.constant 0 : i32
    return %1, %c0_i32 : i32, i32
  }
  func.func @transform_4(%arg0: i32, %arg1: i32) -> (i32, i32) {
    %c0_i32 = arith.constant 0 : i32
    %c0_i32_0 = arith.constant 0 : i32
    %c0_i32_1 = arith.constant 0 : i32
    return %c0_i32, %c0_i32_0 : i32, i32
  }
  func.func @transform_5(%arg0: i32, %arg1: i32) -> (i32, i32, i32) {
    %c0_i32 = arith.constant 0 : i32
    %c0_i32_0 = arith.constant 0 : i32
    %c0_i32_1 = arith.constant 0 : i32
    return %arg0, %c0_i32, %c0_i32_0 : i32, i32, i32
  }
}

</mosaic_0001>

<llo_original>
// kernel: mlp_forward.1
$region0: #{mlp_forward.1}
  #allocation0 [shape = 'u32[]', space=smem, size = 0x4, offset = 0x4, fixed_abs, tag = 'smem constant byte address 0x4 - core index']
  #allocation1 [shape = 'u32[72,128]{1,0:T(1,128)}', space=vmem, size = 0x9000, scoped, tag = 'internal scratch']
  %s0 = inlined_call_operand.vmem [shape: bf16[8,32], index: 0, kind: input, shape index: {}]
  %s1 = inlined_call_operand.hbm [shape: bf16[32,256], index: 1, kind: input, shape index: {}]
  %s2 = inlined_call_operand.vmem [shape: f32[2,256], index: 2, kind: input, shape index: {}]
  %s3 = inlined_call_operand.hbm [shape: bf16[256,128], index: 3, kind: input, shape index: {}]
  %s4 = inlined_call_operand.vmem [shape: f32[1,128], index: 4, kind: input, shape index: {}]
  %s5 = inlined_call_operand.hbm [shape: f32[1,8,128], index: 5, kind: output, shape index: {}]
  %s6 = sld [smem:[#allocation0]]
  $region65: #{mlp_forward.1} parent=0
    _
  %s8 = ssub.s32 1, %s6
  %s9 = scalar_select 0, %s8, %s6
  $region1: #{mlp_forward.1} parent=0
    #allocation2 [shape = 'u8[16384]{0}', space=vmem, size = 0x4000, scoped, tag = 'input window, operand 1']
    #allocation3 [shape = 's32[2]{0}', space=sflag, size = 0x8, scoped, tag = 'scoped memory for mlp_forward.1']
    #allocation4 [shape = 's32[2]{0}', space=sflag, size = 0x8, scoped, tag = 'scoped memory for mlp_forward.1']
    #allocation5 [shape = 'u8[65536]{0}', space=vmem, size = 0x10000, scoped, tag = 'input window, operand 3']
    #allocation6 [shape = 's32[2]{0}', space=sflag, size = 0x8, scoped, tag = 'scoped memory for mlp_forward.1']
    #allocation7 [shape = 'u8[4096]{0}', space=vmem, size = 0x1000, scoped, tag = 'output window, operand 0, single buffered']
    %10 = vsyncpa [#allocation3], 0
    %s11 = scalar_lea.sflag [#allocation3], 1
    %12 = vsyncpa %s11, 0
    %13 = vsyncpa [#allocation6], 0
    %s14 = scalar_lea.sflag [#allocation6], 1
    %15 = vsyncpa %s14, 0
    %16 = vsyncpa [#allocation4], 0
    loop: start=0, step=1, limit=4
    $region2: #{mlp_forward.1} parent=1 // loop_pre_header
      _
    $region3: #{mlp_forward.1} parent=1 // loop_header
      %s18 = sphi 0, %s22
      %p19 = scmp.ge.s32.totalorder %s18, 4
      %s25 = sphi 0, %s37
      %s26 = sphi 0, %s33
      %s27 = sphi 0, %s25
      %s28 = sphi 0, %s26
      %s29 = sphi 0, %s27
      %s30 = sphi 0, %s28
      %s38 = sphi 0, %s38
      %s40 = sphi 0, %s38
      %s41 = sphi 0, %s40
      %s55 = sphi 0, %s41
      %s65 = sphi 0, %s67
      %s68 = sphi 0, %s65
      %s69 = sphi 0, %s68
      %s85 = sphi 0, %s69
      %s95 = sphi 0, %s97
      %s98 = sphi 0, %s95
      %s99 = sphi 0, %s98
      %s115 = sphi 0, %s99
      %s125 = sphi 0, %s127
      %s128 = sphi 0, %s125
      %s129 = sphi 0, %s128
      %s145 = sphi 0, %s129
      %s149 = sphi 0, %s149
      %s151 = sphi 0, %s149
      %s152 = sphi 0, %s151
      %s166 = sphi 0, %s152
      %s172 = sphi 0, %s174
      %s175 = sphi 0, %s172
      %s176 = sphi 0, %s175
      %s192 = sphi 0, %s176
    $region4: #{mlp_forward.1} parent=1 // loop_header_branch
      %21 = sbr.rel (%p19) target = $region8
    $region5: #{mlp_forward.1} parent=1 // loop_body
      %s23 = ssub.s32 %s18, 1
      %s24 = ssub.s32 %s18, 2
      %s31 = sadd.s32 1, %s26
      %p32 = scmp.ge.s32.totalorder %s31, 2
      %s33 = scalar_select %p32, 0, %s31
      %s34 = sadd.s32 1, %s25
      %s35 = scalar_select %p32, %s34, %s25
      %p36 = scmp.ge.s32.totalorder %s35, 1
      %s37 = scalar_select %p36, 0, %s35
      %s39 = sadd.s32 %s38, 1
      %p42 = scmp.eq.s32.totalorder %s18, 1
      %p43 = scmp.ne.s32.totalorder %s38, %s40
      %p44 = scmp.eq.s32.totalorder %s18, 0
      %p45 = por %p43, %p44
      %p46 = scmp.ne.s32.totalorder %s38, %s40
      %p47 = scmp.eq.s32.totalorder %s23, 1
      %p48 = por %p46, %p47
      %p49 = scmp.ne.s32.totalorder %s40, %s41
      %p50 = scmp.eq.s32.totalorder %s23, 0
      %p51 = por %p49, %p50
      %p52 = scmp.ne.s32.totalorder %s40, %s41
      %p53 = scmp.eq.s32.totalorder %s24, 1
      %p54 = por %p52, %p53
      %p56 = scmp.ne.s32.totalorder %s41, %s55
      %p57 = scmp.eq.s32.totalorder %s24, 0
      %p58 = por %p56, %p57
      %s59 = smul.u32 %s25, 2
      %s60 = sadd.s32 %s59, %s26
      %s61 = smul.u32 %s37, 2
      %s62 = sadd.s32 %s61, %s33
      %s63 = ssub.s32 %s60, %s62
      %p64 = scmp.eq.s32.totalorder %s63, 0
      %s66 = sadd.s32 %s65, 1
      %s67 = scalar_select %p64, %s65, %s66
      %p70 = pneg %p64
      %p71 = scmp.eq.s32.totalorder %s18, 1
      %p72 = por %p70, %p71
      %p73 = scmp.ne.s32.totalorder %s65, %s68
      %p74 = scmp.eq.s32.totalorder %s18, 0
      %p75 = por %p73, %p74
      %p76 = scmp.ne.s32.totalorder %s65, %s68
      %p77 = scmp.eq.s32.totalorder %s23, 1
      %p78 = por %p76, %p77
      %p79 = scmp.ne.s32.totalorder %s68, %s69
      %p80 = scmp.eq.s32.totalorder %s23, 0
      %p81 = por %p79, %p80
      %p82 = scmp.ne.s32.totalorder %s68, %s69
      %p83 = scmp.eq.s32.totalorder %s24, 1
      %p84 = por %p82, %p83
      %p86 = scmp.ne.s32.totalorder %s69, %s85
      %p87 = scmp.eq.s32.totalorder %s24, 0
      %p88 = por %p86, %p87
      %s89 = smul.u32 %s25, 2
      %s90 = sadd.s32 %s89, %s26
      %s91 = smul.u32 %s37, 2
      %s92 = sadd.s32 %s91, %s33
      %s93 = ssub.s32 %s90, %s92
      %p94 = scmp.eq.s32.totalorder %s93, 0
      %s96 = sadd.s32 %s95, 1
      %s97 = scalar_select %p94, %s95, %s96
      %p100 = pneg %p94
      %p101 = scmp.eq.s32.totalorder %s18, 1
      %p102 = por %p100, %p101
      %p103 = scmp.ne.s32.totalorder %s95, %s98
      %p104 = scmp.eq.s32.totalorder %s18, 0
      %p105 = por %p103, %p104
      %p106 = scmp.ne.s32.totalorder %s95, %s98
      %p107 = scmp.eq.s32.totalorder %s23, 1
      %p108 = por %p106, %p107
      %p109 = scmp.ne.s32.totalorder %s98, %s99
      %p110 = scmp.eq.s32.totalorder %s23, 0
      %p111 = por %p109, %p110
      %p112 = scmp.ne.s32.totalorder %s98, %s99
      %p113 = scmp.eq.s32.totalorder %s24, 1
      %p114 = por %p112, %p113
      %p116 = scmp.ne.s32.totalorder %s99, %s115
      %p117 = scmp.eq.s32.totalorder %s24, 0
      %p118 = por %p116, %p117
      %s119 = smul.u32 %s25, 2
      %s120 = sadd.s32 %s119, %s26
      %s121 = smul.u32 %s37, 2
      %s122 = sadd.s32 %s121, %s33
      %s123 = ssub.s32 %s120, %s122
      %p124 = scmp.eq.s32.totalorder %s123, 0
      %s126 = sadd.s32 %s125, 1
      %s127 = scalar_select %p124, %s125, %s126
      %p130 = pneg %p124
      %p131 = scmp.eq.s32.totalorder %s18, 1
      %p132 = por %p130, %p131
      %p133 = scmp.ne.s32.totalorder %s125, %s128
      %p134 = scmp.eq.s32.totalorder %s18, 0
      %p135 = por %p133, %p134
      %p136 = scmp.ne.s32.totalorder %s125, %s128
      %p137 = scmp.eq.s32.totalorder %s23, 1
      %p138 = por %p136, %p137
      %p139 = scmp.ne.s32.totalorder %s128, %s129
      %p140 = scmp.eq.s32.totalorder %s23, 0
      %p141 = por %p139, %p140
      %p142 = scmp.ne.s32.totalorder %s128, %s129
      %p143 = scmp.eq.s32.totalorder %s24, 1
      %p144 = por %p142, %p143
      %p146 = scmp.ne.s32.totalorder %s129, %s145
      %p147 = scmp.eq.s32.totalorder %s24, 0
      %p148 = por %p146, %p147
      %s150 = sadd.s32 %s149, 1
      %p153 = scmp.eq.s32.totalorder %s18, 1
      %p154 = scmp.ne.s32.totalorder %s149, %s151
      %p155 = scmp.eq.s32.totalorder %s18, 0
      %p156 = por %p154, %p155
      %p157 = scmp.ne.s32.totalorder %s149, %s151
      %p158 = scmp.eq.s32.totalorder %s23, 1
      %p159 = por %p157, %p158
      %p160 = scmp.ne.s32.totalorder %s151, %s152
      %p161 = scmp.eq.s32.totalorder %s23, 0
      %p162 = por %p160, %p161
      %p163 = scmp.ne.s32.totalorder %s151, %s152
      %p164 = scmp.eq.s32.totalorder %s24, 1
      %p165 = por %p163, %p164
      %p167 = scmp.ne.s32.totalorder %s152, %s166
      %p168 = scmp.eq.s32.totalorder %s24, 0
      %p169 = por %p167, %p168
      %s170 = ssub.s32 %s25, %s37
      %p171 = scmp.eq.s32.totalorder %s170, 0
      %s173 = sadd.s32 %s172, 1
      %s174 = scalar_select %p171, %s172, %s173
      %p177 = pneg %p171
      %p178 = scmp.eq.s32.totalorder %s18, 1
      %p179 = por %p177, %p178
      %p180 = scmp.ne.s32.totalorder %s172, %s175
      %p181 = scmp.eq.s32.totalorder %s18, 0
      %p182 = por %p180, %p181
      %p183 = scmp.ne.s32.totalorder %s172, %s175
      %p184 = scmp.eq.s32.totalorder %s23, 1
      %p185 = por %p183, %p184
      %p186 = scmp.ne.s32.totalorder %s175, %s176
      %p187 = scmp.eq.s32.totalorder %s23, 0
      %p188 = por %p186, %p187
      %p189 = scmp.ne.s32.totalorder %s175, %s176
      %p190 = scmp.eq.s32.totalorder %s24, 1
      %p191 = por %p189, %p190
      %p193 = scmp.ne.s32.totalorder %s176, %s192
      %p194 = scmp.eq.s32.totalorder %s24, 0
      %p195 = por %p193, %p194
      %p196 = scmp.le.s32.totalorder 1, %s18
      %p197 = scmp.lt.s32.totalorder %s18, 3
      %p198 = pnand %p196, %p197
      %p199 = pneg %p198
      // Predicated region
      $region9: #{mlp_forward.1} parent=5 // pred_check
        _
      $region10: #{mlp_forward.1} parent=5 // pred_check_branch
        %201 = sbr.rel (%p198) target = $region12
      $region11: #{mlp_forward.1} parent=5 // pred_region
        %s202 = ssub.s32 %s18, 1
        // Predicated region
        $region13: #{mlp_forward.1} parent=11 // pred_check
          %p203 = pneg %p51
        $region14: #{mlp_forward.1} parent=11 // pred_check_branch
          %205 = sbr.rel (%p203) target = $region16
        $region15: #{mlp_forward.1} parent=11 // pred_region
          _
        $region16: #{mlp_forward.1} parent=11 // pred_fallthru
          _
        // Predicated region
        $region17: #{mlp_forward.1} parent=11 // pred_check
          %p206 = pneg %p162
        $region18: #{mlp_forward.1} parent=11 // pred_check_branch
          %208 = sbr.rel (%p206) target = $region20
        $region19: #{mlp_forward.1} parent=11 // pred_region
          _
        $region20: #{mlp_forward.1} parent=11 // pred_fallthru
          _
      $region12: #{mlp_forward.1} parent=5 // pred_fallthru
        _
      %p209 = scmp.lt.s32.totalorder %s18, 2
      // Predicated region
      $region21: #{mlp_forward.1} parent=5 // pred_check
        %p210 = pneg %p209
      $region22: #{mlp_forward.1} parent=5 // pred_check_branch
        %212 = sbr.rel (%p210) target = $region24
      $region23: #{mlp_forward.1} parent=5 // pred_region
        // Predicated region
        $region25: #{mlp_forward.1} parent=23 // pred_check
          %p213 = pneg %p75
        $region26: #{mlp_forward.1} parent=23 // pred_check_branch
          %215 = sbr.rel (%p213) target = $region28
        $region27: #{mlp_forward.1} parent=23 // pred_region
          %s216 = sand.u32 %s65, 1
          %s217 = scalar_lea.sflag [#allocation3], %s216
          %s218 = sand.u32 %s65, 1
          %s219 = smul.addr %s218, 16
          %s220 = scalar_lea.vmem [#allocation2], %s219
          %s221 = smul.u32 %s25, 2
          %s222 = sadd.s32 %s221, %s26
          %224 = vsyncadd %s217, 0
          %s225 = smul.addr %s222, 4
          %s226 = scalar_lea.hbm %s1, %s225
          %s227 = sshll.u32 %s226, 4
          %s228 = int_to_ptr.hbm [resolvable:$true] %s227
          %s229 = sshll.u32 %s220, 4
          %s230 = int_to_ptr.vmem [resolvable:$true] %s229
          %235 = dma.hbm_to_vmem [thread:$0]  %s228, 256, %s230, %s217, 128, 64, 4
        $region28: #{mlp_forward.1} parent=23 // pred_fallthru
          _
        // Predicated region
        $region29: #{mlp_forward.1} parent=23 // pred_check
          %p236 = pneg %p105
        $region30: #{mlp_forward.1} parent=23 // pred_check_branch
          %238 = sbr.rel (%p236) target = $region32
        $region31: #{mlp_forward.1} parent=23 // pred_region
          %s239 = smul.u32 %s25, 2
          %s240 = sadd.s32 %s239, %s26
          %p241 = scmp.lt.s32.totalorder %s240, 1
          %s242 = scalar_select %p241, %s240, 1
          %s243 = smul.addr %s242, 2
          %s244 = scalar_lea.vmem %s2, %s243
          %s245 = smul.u32 %s25, 2
          %s246 = sadd.s32 %s245, %s26
        $region32: #{mlp_forward.1} parent=23 // pred_fallthru
          _
        // Predicated region
        $region33: #{mlp_forward.1} parent=23 // pred_check
          %p247 = pneg %p135
        $region34: #{mlp_forward.1} parent=23 // pred_check_branch
          %249 = sbr.rel (%p247) target = $region36
        $region35: #{mlp_forward.1} parent=23 // pred_region
          %s250 = sand.u32 %s125, 1
          %s251 = scalar_lea.sflag [#allocation6], %s250
          %s252 = sand.u32 %s125, 1
          %s253 = smul.addr %s252, 64
          %s254 = scalar_lea.vmem [#allocation5], %s253
          %s255 = smul.u32 %s25, 2
          %s256 = sadd.s32 %s255, %s26
          %s257 = smul.u32 16, %s256
          %259 = vsyncadd %s251, 0
          %s260 = smul.addr %s257, 4
          %s261 = scalar_lea.hbm %s3, %s260
          %s262 = sshll.u32 %s261, 4
          %s263 = int_to_ptr.hbm [resolvable:$true] %s262
          %s264 = sshll.u32 %s254, 4
          %s265 = int_to_ptr.vmem [resolvable:$true] %s264
          %270 = dma.hbm_to_vmem [thread:$0]  %s263, 1024, %s265, %s251, 64, 64, 4
        $region36: #{mlp_forward.1} parent=23 // pred_fallthru
          _
      $region24: #{mlp_forward.1} parent=5 // pred_fallthru
        _
      %p271 = scmp.le.s32.totalorder 1, %s18
      %p272 = scmp.lt.s32.totalorder %s18, 3
      %p273 = pnand %p271, %p272
      %p274 = pneg %p273
      // Predicated region
      $region37: #{mlp_forward.1} parent=5 // pred_check
        _
      $region38: #{mlp_forward.1} parent=5 // pred_check_branch
        %276 = sbr.rel (%p273) target = $region40
      $region39: #{mlp_forward.1} parent=5 // pred_region
        %s277 = ssub.s32 %s18, 1
        %s278 = sand.u32 %s68, 1
        %s279 = scalar_lea.sflag [#allocation3], %s278
        %s280 = sand.u32 %s68, 1
        %s281 = smul.addr %s280, 16
        %s282 = scalar_lea.vmem [#allocation2], %s281
        // Predicated region
        $region41: #{mlp_forward.1} parent=39 // pred_check
          %p283 = pneg %p81
        $region42: #{mlp_forward.1} parent=39 // pred_check_branch
          %285 = sbr.rel (%p283) target = $region44
        $region43: #{mlp_forward.1} parent=39 // pred_region
          %287 = dma.done %s279, 256
        $region44: #{mlp_forward.1} parent=39 // pred_fallthru
          _
        %s288 = sand.u32 %s128, 1
        %s289 = scalar_lea.sflag [#allocation6], %s288
        %s290 = sand.u32 %s128, 1
        %s291 = smul.addr %s290, 64
        %s292 = scalar_lea.vmem [#allocation5], %s291
        // Predicated region
        $region45: #{mlp_forward.1} parent=39 // pred_check
          %p293 = pneg %p141
        $region46: #{mlp_forward.1} parent=39 // pred_check_branch
          %295 = sbr.rel (%p293) target = $region48
        $region47: #{mlp_forward.1} parent=39 // pred_region
          %297 = dma.done %s289, 1024
        $region48: #{mlp_forward.1} parent=39 // pred_fallthru
          _
        %p298 = pneg %p51
        %p299 = pneg %p48
        %s300 = sand.u32 %s68, 1
        %s301 = scalar_lea.sflag [#allocation3], %s300
        %s302 = sand.u32 %s68, 1
        %s303 = smul.addr %s302, 16
        %s304 = scalar_lea.vmem [#allocation2], %s303
        %p305 = pneg %p81
        %p306 = pneg %p78
        %s307 = smul.u32 %s27, 2
        %s308 = sadd.s32 %s307, %s28
        %p309 = scmp.lt.s32.totalorder %s308, 1
        %s310 = scalar_select %p309, %s308, 1
        %s311 = smul.addr %s310, 2
        %s312 = scalar_lea.vmem %s2, %s311
        %p313 = pneg %p111
        %p314 = pneg %p108
        %s315 = sand.u32 %s128, 1
        %s316 = scalar_lea.sflag [#allocation6], %s315
        %s317 = sand.u32 %s128, 1
        %s318 = smul.addr %s317, 64
        %s319 = scalar_lea.vmem [#allocation5], %s318
        %p320 = pneg %p141
        %p321 = pneg %p138
        %p322 = pneg %p162
        %p323 = pneg %p159
        %p324 = pneg %p188
        %p325 = pneg %p185
        %s326 = smul.u32 %s27, 2
        %s327 = sadd.s32 %s326, %s28
        %s328 = smul.u32 %s27, 2
        %s329 = sadd.s32 %s328, %s28
        %p330 = scmp.lt.s32.totalorder %s329, 1
        %s331 = scalar_select %p330, %s329, 1
        %s332 = smul.addr %s331, 2
        %s333 = scalar_lea.vmem %s2, %s332
        %s334 = smul.u32 %s27, 2
        %s335 = sadd.s32 %s334, %s28
        %s336 = smul.u32 %s27, 2
        %s337 = sadd.s32 %s336, %s28
        %s338 = smul.u32 16, %s337
        %p340 = scmp.eq.s32.totalorder %s28, 0
        // Predicated region
        $region49: #{mlp_forward.1} parent=39 // pred_check
          %p341 = pneg %p340
        $region50: #{mlp_forward.1} parent=39 // pred_check_branch
          %343 = sbr.rel (%p341) target = $region52
        $region51: #{mlp_forward.1} parent=39 // pred_region
          %v344 = vld [vmem:[%s4] sm:$0x1]
          %v346 = vperm.slane %v344, 0
          %p348 = scmp.eq.s32.totalorder %s27, 0
          %s349 = scalar_select %p348, 1, 0
          %v350 = vstv %s349
          %vm351 = vcmp.eq.s32.totalorder %v350, 1
          %v352 = vsel %vm351, %v346, 0.0
          %353 = vst [vmem:[#allocation7] sm:$0xff] %v352
        $region52: #{mlp_forward.1} parent=39 // pred_fallthru
          _
        %v354 = vld [vmem:[%s0] sm:$0xf]
        %v355 = vld [vmem:[%s282] sm:$0xf]
        %v356 = vld [vmem:[%s282 + $0x4] sm:$0xf]
        %v357 = vld [vmem:[%s282 + $0x8] sm:$0xf]
        %v358 = vld [vmem:[%s282 + $0xc] sm:$0xf]
        %v363 = vunpack.c.l.b16 %v355
        %v364 = vunpack.c.l.b16 %v356
        %v365 = vunpack.c.l.b16 %v357
        %v366 = vunpack.c.l.b16 %v358
        %v367 = vpack.c.b16 %v364, %v363
        %v368 = vpack.c.b16 %v366, %v365
        %vm371 = vcmask 261120
        %v373 = vsel %vm371, %v354, 0
        %375 = vmatpush.bf16.msra.mxu0 0
        %376 = vmatpush.bf16.msra.mxu0 0
        %377 = vmatpush.bf16.msra.mxu0 0
        %378 = vmatpush.bf16.msra.mxu0 0
        %379 = vmatpush.bf16.msra.mxu0 0
        %380 = vmatpush.bf16.msra.mxu0 0
        %381 = vmatpush.bf16.msra.mxu0 %v368
        %382 = vmatpush.bf16.msra.mxu0 %v367
        %383 = vmatmul.bf16.gmra.mxu0 %v373
        %v384 = vpop.f32.mrf.mxu0
        %v385 = vadd.f32 0.0, %v384
        %v386 = vpop.f32.mrf.mxu0
        %387 = vdwg.mxu0
        %v388 = vrot.slane %v385, 4
        %v389 = vadd.f32 %v385, %v388
        %v390 = vrot.slane %v389, 2
        %v391 = vadd.f32 %v389, %v390
        %v392 = vrot.slane %v391, 1
        %v393 = vadd.f32 %v391, %v392
        %v394 = vrcp.pop 8.0
        %v395 = vmul.f32 8.0, %v394
        %v396 = vsub.f32 1.0, %v395
        %v397 = vmul.f32 %v394, %v396
        %v398 = vadd.f32 %v394, %v397
        %vm399 = vweird.f32 %v394
        %v400 = vsel %vm399, %v394, %v398
        %v401 = vmul.f32 %v393, %v400
        %v402 = vmul.f32 %v385, %v385
        %v403 = vrot.slane %v402, 4
        %v404 = vadd.f32 %v402, %v403
        %v405 = vrot.slane %v404, 2
        %v406 = vadd.f32 %v404, %v405
        %v407 = vrot.slane %v406, 1
        %v408 = vadd.f32 %v406, %v407
        %v409 = vmul.f32 %v408, %v400
        %v410 = vmul.f32 %v401, %v401
        %v411 = vsub.f32 %v409, %v410
        %v412 = vmax.f32 %v411, 0.0
        %v413 = vld [vmem:[%s333] sm:$0x1]
        %v414 = vadd.f32 %v412, 1e-05
        %v415 = vrsqrt.pop %v414
        %v416 = vmul.f32 %v415, %v414
        %v417 = vmul.f32 %v416, %v415
        %v418 = vmul.f32 0.5, %v417
        %v419 = vsub.f32 1.5, %v418
        %v420 = vmul.f32 %v415, %v419
        %vm421 = vweird.f32 %v414
        %vm422 = vweird.f32 %v415
        %vm423 = vmor %vm421, %vm422
        %v424 = vsel %vm423, %v415, %v420
        %v425 = vmul.f32 %v413, %v424
        %v426 = vld [vmem:[%s333 + $0x1] sm:$0x1]
        %v427 = vmul.f32 %v401, %v425
        %v428 = vsub.f32 %v426, %v427
        %v429 = vperm.slane %v425, 0
        %v430 = vmul.f32 %v385, %v429
        %v431 = vperm.slane %v428, 0
        %v432 = vadd.f32 %v430, %v431
        %v433 = vmax.f32 %v432, 0.0
        %v434 = vld [vmem:[#allocation7] sm:$0xff]
        %v435 = vpack.c.bf16 %v433, %v433
        %v436 = vld [vmem:[%s292] sm:$0xf]
        %v437 = vld [vmem:[%s292 + $0x4] sm:$0xf]
        %v438 = vld [vmem:[%s292 + $0x8] sm:$0xf]
        %v439 = vld [vmem:[%s292 + $0xc] sm:$0xf]
        %v440 = vld [vmem:[%s292 + $0x10] sm:$0xf]
        %v441 = vld [vmem:[%s292 + $0x14] sm:$0xf]
        %v442 = vld [vmem:[%s292 + $0x18] sm:$0xf]
        %v443 = vld [vmem:[%s292 + $0x1c] sm:$0xf]
        %v444 = vld [vmem:[%s292 + $0x20] sm:$0xf]
        %v445 = vld [vmem:[%s292 + $0x24] sm:$0xf]
        %v446 = vld [vmem:[%s292 + $0x28] sm:$0xf]
        %v447 = vld [vmem:[%s292 + $0x2c] sm:$0xf]
        %v448 = vld [vmem:[%s292 + $0x30] sm:$0xf]
        %v449 = vld [vmem:[%s292 + $0x34] sm:$0xf]
        %v450 = vld [vmem:[%s292 + $0x38] sm:$0xf]
        %v451 = vld [vmem:[%s292 + $0x3c] sm:$0xf]
        %v468 = vunpack.c.l.b16 %v436
        %v469 = vunpack.c.l.b16 %v437
        %v470 = vunpack.c.l.b16 %v438
        %v471 = vunpack.c.l.b16 %v439
        %v472 = vunpack.c.l.b16 %v440
        %v473 = vunpack.c.l.b16 %v441
        %v474 = vunpack.c.l.b16 %v442
        %v475 = vunpack.c.l.b16 %v443
        %v476 = vunpack.c.l.b16 %v444
        %v477 = vunpack.c.l.b16 %v445
        %v478 = vunpack.c.l.b16 %v446
        %v479 = vunpack.c.l.b16 %v447
        %v480 = vunpack.c.l.b16 %v448
        %v481 = vunpack.c.l.b16 %v449
        %v482 = vunpack.c.l.b16 %v450
        %v483 = vunpack.c.l.b16 %v451
        %v484 = vpack.c.b16 %v469, %v468
        %v485 = vpack.c.b16 %v471, %v470
        %v486 = vpack.c.b16 %v473, %v472
        %v487 = vpack.c.b16 %v475, %v474
        %v488 = vpack.c.b16 %v477, %v476
        %v489 = vpack.c.b16 %v479, %v478
        %v490 = vpack.c.b16 %v481, %v480
        %v491 = vpack.c.b16 %v483, %v482
        %500 = vmatpush.bf16.msra.mxu0 %v491
        %501 = vmatpush.bf16.msra.mxu0 %v490
        %502 = vmatpush.bf16.msra.mxu0 %v489
        %503 = vmatpush.bf16.msra.mxu0 %v488
        %504 = vmatpush.bf16.msra.mxu0 %v487
        %505 = vmatpush.bf16.msra.mxu0 %v486
        %506 = vmatpush.bf16.msra.mxu0 %v485
        %507 = vmatpush.bf16.msra.mxu0 %v484
        %508 = vmatmul.bf16.gmra.mxu0 %v435
        %v509 = vpop.f32.mrf.mxu0
        %v510 = vadd.f32 0.0, %v509
        %v511 = vpop.f32.mrf.mxu0
        %512 = vdwg.mxu0
        %v513 = vadd.f32 %v434, %v510
        %514 = vst [vmem:[#allocation7] sm:$0xff] %v513
        // Predicated region
        $region53: #{mlp_forward.1} parent=39 // pred_check
          %p515 = pneg %p185
        $region54: #{mlp_forward.1} parent=39 // pred_check_branch
          %517 = sbr.rel (%p515) target = $region56
        $region55: #{mlp_forward.1} parent=39 // pred_region
          %519 = vsyncadd [#allocation4], 0
          %s520 = smul.addr %s27, 8
          %s521 = scalar_lea.hbm %s5, %s520
          %s523 = sshll.u32 [#allocation7], 4
          %s524 = int_to_ptr.vmem [resolvable:$true] %s523
          %s525 = sshll.u32 %s521, 4
          %s526 = int_to_ptr.hbm [resolvable:$true] %s525
          %528 = dma.vmem_to_hbm [thread:$0]  %s524, 128, %s526, [#allocation4]
        $region56: #{mlp_forward.1} parent=39 // pred_fallthru
          _
        // Predicated region
        $region57: #{mlp_forward.1} parent=39 // pred_check
          %p529 = pneg %p185
        $region58: #{mlp_forward.1} parent=39 // pred_check_branch
          %531 = sbr.rel (%p529) target = $region60
        $region59: #{mlp_forward.1} parent=39 // pred_region
          %533 = dma.done [#allocation4], 128
        $region60: #{mlp_forward.1} parent=39 // pred_fallthru
          _
      $region40: #{mlp_forward.1} parent=5 // pred_fallthru
        _
      %p534 = scmp.le.s32.totalorder 2, %s18
      // Predicated region
      $region61: #{mlp_forward.1} parent=5 // pred_check
        %p535 = pneg %p534
      $region62: #{mlp_forward.1} parent=5 // pred_check_branch
        %537 = sbr.rel (%p535) target = $region64
      $region63: #{mlp_forward.1} parent=5 // pred_region
        %s538 = ssub.s32 %s18, 2
      $region64: #{mlp_forward.1} parent=5 // pred_fallthru
        _
    $region6: #{mlp_forward.1} parent=1 // loop_footer
      %s22 = sadd.s32 1, %s18
    $region7: #{mlp_forward.1} parent=1 // loop_footer_branch
      %17 = sbr.rel target = $region3
    $region8: #{mlp_forward.1} parent=1 // loop_exit
      _
    %539 = vsyncpa [#allocation3], 1
    %s540 = scalar_lea.sflag [#allocation3], 1
    %541 = vsyncpa %s540, 1
    %542 = vsyncpa [#allocation6], 1
    %s543 = scalar_lea.sflag [#allocation6], 1
    %544 = vsyncpa %s543, 1
    %545 = vsyncpa [#allocation4], 1
    %s546 = scalar_lea.sflag [#allocation4], 1
    %547 = vsyncpa %s546, 1

</llo_original>
